<compile_context>
chip_gen: v7x
topology: tpu7x:2x2x1
jax: 0.10.0
libtpu: 0.0.40
codegen_flags: <defaults>
</compile_context>

<pallas_src>
import jax
import jax.numpy as jnp
import numpy as np
from jax.experimental import pallas as pl
from jax.experimental.pallas import tpu as pltpu


def _round_up(v, m):
    return ((v + m - 1) // m) * m


def _make_kernel(num_sub, sub, compute_dtype):
    def kernel(x_ref, params_ref, b2_ref, o_ref):
        # params_ref: (H, 3) = [w1 | b1 | w2] fused, grid-invariant, VMEM resident.
        # Read / cast the tiny parameters once per grid step (outside the sub loop).
        w1 = params_ref[:, 0:1].astype(compute_dtype)   # (H, 1)
        b1 = params_ref[:, 1:2].astype(compute_dtype)   # (H, 1)
        w2 = params_ref[:, 2:3].astype(compute_dtype)   # (H, 1)
        b2 = b2_ref[...]                                 # (1, 1) f32

        # Statically unrolled sub-chunk loop: compile-time trip count and static
        # slice offsets (zero-cost views).  Each iteration's (H, sub)
        # intermediate dies at its store, so live vregs stay ~H*sub/1024.
        for s in range(num_sub):
            lo = s * sub
            xs = x_ref[:, lo:lo + sub].astype(compute_dtype)        # (1, sub)
            # Layer 1: hidden[j, n] = relu(x[n]*w1[j] + b1[j])  -> VPU broadcast ops
            h = jnp.maximum(xs * w1 + b1, 0.0)                      # (H, sub)
            # Layer 2: y[n] = sum_j hidden[j, n]*w2[j] (f32 accumulation) + b2
            y = jnp.sum(h * w2, axis=0, keepdims=True,
                        dtype=jnp.float32)                          # (1, sub)
            o_ref[:, lo:lo + sub] = (y + b2).astype(o_ref.dtype)

    return kernel


def _batch_axis_semantics(grid_len):
    # Only core-parallel semantics actually shard a grid axis onto v7x's two
    # TensorCores ("parallel" vs "arbitrary" is a measured near no-op).  Gate on
    # an even grid so each core gets whole blocks; single-TC v5e/v6e keep the
    # portable string tag.
    kind = jax.devices()[0].device_kind.lower()
    if ("v7" in kind or "7x" in kind) and grid_len >= 2 and grid_len % 2 == 0:
        return (pltpu.CORE_PARALLEL,)
    return ("parallel",)


def red_ventas_forward_pallas(x, w1, b1, w2, b2, *, block_n=4096, sub_n=512,
                              compute_dtype=jnp.float32):
    """Pallas forward pass of RedVentas for entrada=1, salida=1.

    x : (N, 1) f32
    w1: (ocultas, 1)  -- PyTorch capa_oculta.weight layout (out_features, in_features)
    b1: (ocultas,)
    w2: (1, ocultas)  -- PyTorch capa_salida.weight layout
    b2: (1,)
    """
    n = x.shape[0]
    hid = w1.shape[0]
    assert x.shape == (n, 1) and w1.shape == (hid, 1)
    assert b1.shape == (hid,) and w2.shape == (1, hid) and b2.shape == (1,)
    # Note: for general entrada/salida >= 128 this specialization should be
    # replaced by a standard MXU matmul kernel; for 1->H->1 the VPU/XLU path is
    # exact and avoids all MXU padding waste.

    # Lane-dense layouts; every reshape below is free (row-major, same order).
    x_row = x.reshape(1, n)                               # batch along lanes
    params = jnp.concatenate(                             # (H, 3) = [w1|b1|w2]
        [w1.reshape(hid, 1), b1.reshape(hid, 1), w2.reshape(hid, 1)], axis=1)
    b2_11 = b2.reshape(1, 1)

    # --- Tiling -----------------------------------------------------------
    padded_n = _round_up(n, 128)                          # lane granule
    sub = max(128, (sub_n // 128) * 128)                  # compute sub-tile
    sub = min(sub, padded_n)                              # never exceed batch
    tile = max(sub, (block_n // sub) * sub)               # DMA tile (mult. of sub)
    tile = min(tile, _round_up(padded_n, sub))            # clamp to (padded) batch
    num_sub = tile // sub                                  # static trip count
    grid = (pl.cdiv(n, tile),)

    def param_spec(shape):
        # Full-array, grid-invariant -> stays resident in VMEM across the grid.
        return pl.BlockSpec(shape, lambda i: (0, 0))

    out = pl.pallas_call(
        _make_kernel(num_sub, sub, compute_dtype),
        out_shape=jax.ShapeDtypeStruct((1, n), jnp.float32),
        grid=grid,
        in_specs=[
            pl.BlockSpec((1, tile), lambda i: (0, i)),    # x: streamed over batch
            param_spec((hid, 3)),                         # fused [w1|b1|w2]
            param_spec((1, 1)),                           # b2 (lane-padded; tiny)
        ],
        out_specs=pl.BlockSpec((1, tile), lambda i: (0, i)),
        compiler_params=pltpu.CompilerParams(
            dimension_semantics=_batch_axis_semantics(grid[0])),
    )(x_row, params, b2_11)

    return out.reshape(n, 1)


def red_ventas_forward(x, w1, b1, w2, b2, *, min_pallas_batch=2048,
                       force_pallas=False, **pallas_kwargs):
    """Dispatcher: tiny batches use the fused XLA expression (pallas_call launch
    overhead dominates there); large batches use the Pallas kernel."""
    n = x.shape[0]
    if not force_pallas and n < min_pallas_batch:
        h = jnp.maximum(x @ w1.T + b1, 0.0)
        return h @ w2.T + b2
    return red_ventas_forward_pallas(x, w1, b1, w2, b2, **pallas_kwargs)


if __name__ == "__main__":
    # Same data as the original script: dia = 1..30, input shape (30, 1).
    x = jnp.arange(1, 31, dtype=jnp.float32).reshape(-1, 1)

    entrada, ocultas, salida = 1, 32, 1

    # Deterministic PyTorch-style init: uniform(-1/sqrt(fan_in), +1/sqrt(fan_in)).
    key = jax.random.PRNGKey(0)
    k1, k2, k3, k4 = jax.random.split(key, 4)
    bound1 = 1.0 / np.sqrt(entrada)
    bound2 = 1.0 / np.sqrt(ocultas)
    # PyTorch weight layouts: (out_features, in_features)
    w1 = jax.random.uniform(k1, (ocultas, entrada), jnp.float32, -bound1, bound1)
    b1 = jax.random.uniform(k2, (ocultas,), jnp.float32, -bound1, bound1)
    w2 = jax.random.uniform(k3, (salida, ocultas), jnp.float32, -bound2, bound2)
    b2 = jax.random.uniform(k4, (salida,), jnp.float32, -bound2, bound2)

    # Pure-JAX reference (matches torch: relu(x @ W1.T + b1) @ W2.T + b2).
    def ref_fwd(xv):
        h = jnp.maximum(xv @ w1.T + b1, 0.0)
        return h @ w2.T + b2

    # 1) Module-sized batch (N=30): force the Pallas path to validate the kernel
    #    (the dispatcher would normally route such a tiny batch to plain XLA).
    y = red_ventas_forward(x, w1, b1, w2, b2, force_pallas=True)
    y = jax.block_until_ready(y)
    assert y.shape == (30, 1)
    np.testing.assert_allclose(np.asarray(y), np.asarray(ref_fwd(x)),
                               rtol=1e-5, atol=1e-5)

    # 2) Large batch exercising the multi-block / multi-sub-chunk path
    #    (grid=2, 8 sub-chunks per block, last block partial).
    n_big = 4736
    x_big = jnp.arange(1, n_big + 1, dtype=jnp.float32).reshape(-1, 1)
    y_big = jax.block_until_ready(red_ventas_forward(x_big, w1, b1, w2, b2))
    y_ref_big = np.asarray(ref_fwd(x_big))
    np.testing.assert_allclose(np.asarray(y_big), y_ref_big, rtol=1e-4, atol=1e-2)

    # 3) bf16 VPU compute path (the v6e/v7x lever; still correct, just slower,
    #    on v5e).  f32 accumulation; use a relative-L2 bound since per-element
    #    cancellation can inflate pointwise relative error.
    y_bf16 = jax.block_until_ready(
        red_ventas_forward(x_big, w1, b1, w2, b2, compute_dtype=jnp.bfloat16))
    rel = (np.linalg.norm(np.asarray(y_bf16) - y_ref_big)
           / (np.linalg.norm(y_ref_big) + 1e-30))
    assert rel < 2e-2, f"bf16 relative L2 error too high: {rel}"

    # 4) Tiny-batch dispatch path (plain fused XLA, no pallas_call launch).
    y_small = jax.block_until_ready(red_ventas_forward(x, w1, b1, w2, b2))
    np.testing.assert_allclose(np.asarray(y_small), np.asarray(ref_fwd(x)),
                               rtol=1e-5, atol=1e-5)

    print("KERNEL_OK")
</pallas_src>

<mosaic_0001>
module attributes {stable_mosaic.version = 11 : i64} {
  func.func @kernel(%arg0: i32, %arg1: memref<1x128xf32, #tpu.memory_space<vmem>>, %arg2: memref<32x3xf32, #tpu.memory_space<vmem>>, %arg3: memref<1x1xf32, #tpu.memory_space<vmem>>, %arg4: memref<1x128xf32, #tpu.memory_space<vmem>>) attributes {dimension_semantics = [#tpu.dimension_semantics<parallel>], iteration_bounds = array<i64: 1>, scalar_prefetch = 0 : i64, scratch_operands = 0 : i64, tpu.core_type = #tpu.core_type<tc>, window_params = [{transform_indices = @transform_0, window_bounds = array<i64: 1, 128>}, {pipeline_mode = #tpu.pipeline_mode<synchronous>, transform_indices = @transform_1, window_bounds = array<i64: 32, 3>}, {pipeline_mode = #tpu.pipeline_mode<synchronous>, transform_indices = @transform_2, window_bounds = array<i64: 1, 1>}, {transform_indices = @transform_3, window_bounds = array<i64: 1, 128>}]} {
    %c0 = arith.constant 0 : index
    %c0_0 = arith.constant 0 : index
    %0 = vector.load %arg2[%c0, %c0_0] : memref<32x3xf32, #tpu.memory_space<vmem>>, vector<32x1xf32>
    %c0_1 = arith.constant 0 : index
    %c1 = arith.constant 1 : index
    %1 = vector.load %arg2[%c0_1, %c1] : memref<32x3xf32, #tpu.memory_space<vmem>>, vector<32x1xf32>
    %c0_2 = arith.constant 0 : index
    %c2 = arith.constant 2 : index
    %2 = vector.load %arg2[%c0_2, %c2] : memref<32x3xf32, #tpu.memory_space<vmem>>, vector<32x1xf32>
    %c0_3 = arith.constant 0 : index
    %c0_4 = arith.constant 0 : index
    %3 = vector.load %arg3[%c0_3, %c0_4] : memref<1x1xf32, #tpu.memory_space<vmem>>, vector<1x1xf32>
    %c0_5 = arith.constant 0 : index
    %c0_6 = arith.constant 0 : index
    %4 = vector.load %arg1[%c0_5, %c0_6] : memref<1x128xf32, #tpu.memory_space<vmem>>, vector<1x128xf32>
    %5 = vector.broadcast %4 : vector<1x128xf32> to vector<32x128xf32>
    %6 = vector.broadcast %0 : vector<32x1xf32> to vector<32x128xf32>
    %7 = arith.mulf %5, %6 : vector<32x128xf32>
    %8 = vector.broadcast %1 : vector<32x1xf32> to vector<32x128xf32>
    %9 = arith.addf %7, %8 : vector<32x128xf32>
    %cst = arith.constant 0.000000e+00 : f32
    %10 = vector.broadcast %cst : f32 to vector<32x128xf32>
    %11 = arith.maximumf %9, %10 : vector<32x128xf32>
    %12 = vector.broadcast %2 : vector<32x1xf32> to vector<32x128xf32>
    %13 = arith.mulf %11, %12 : vector<32x128xf32>
    %cst_7 = arith.constant dense<0.000000e+00> : vector<128xf32>
    %14 = vector.multi_reduction <add>, %13, %cst_7 [0] : vector<32x128xf32> to vector<128xf32>
    %15 = vector.shape_cast %14 : vector<128xf32> to vector<1x128xf32>
    %16 = vector.broadcast %3 : vector<1x1xf32> to vector<1x128xf32>
    %17 = arith.addf %15, %16 : vector<1x128xf32>
    %c0_8 = arith.constant 0 : index
    %c0_9 = arith.constant 0 : index
    %18 = vector.load %arg4[%c0_8, %c0_9] : memref<1x128xf32, #tpu.memory_space<vmem>>, vector<1x128xf32>
    tpu.vector_store %arg4[%c0_8, %c0_9], %17 {strides = array<i32>} : memref<1x128xf32, #tpu.memory_space<vmem>>, vector<1x128xf32>,
    return
  }
  func.func @transform_0(%arg0: i32) -> (i32, i32) {
    %c0_i32 = arith.constant 0 : i32
    %c0_i32_0 = arith.constant 0 : i32
    return %c0_i32, %arg0 : i32, i32
  }
  func.func @transform_1(%arg0: i32) -> (i32, i32) {
    %c0_i32 = arith.constant 0 : i32
    %c0_i32_0 = arith.constant 0 : i32
    %c0_i32_1 = arith.constant 0 : i32
    return %c0_i32, %c0_i32_0 : i32, i32
  }
  func.func @transform_2(%arg0: i32) -> (i32, i32) {
    %c0_i32 = arith.constant 0 : i32
    %c0_i32_0 = arith.constant 0 : i32
    %c0_i32_1 = arith.constant 0 : i32
    return %c0_i32, %c0_i32_0 : i32, i32
  }
  func.func @transform_3(%arg0: i32) -> (i32, i32) {
    %c0_i32 = arith.constant 0 : i32
    %c0_i32_0 = arith.constant 0 : i32
    return %c0_i32, %arg0 : i32, i32
  }
}

</mosaic_0001>

<llo_original>
// kernel: tpu_custom_call.1
$region0: #{tpu_custom_call.1}
  #allocation0 [shape = 'u32[]', space=smem, size = 0x4, offset = 0x4, fixed_abs, tag = 'smem constant byte address 0x4 - core index']
  #allocation1 [shape = 'u32[144,128]{1,0:T(1,128)}', space=vmem, size = 0x12000, scoped, tag = 'internal scratch']
  #allocation2 [shape = 'f32[1,1]{1,0:T(1,128)S(1)}', space=vmem, size = 0x200, scoped, tag = 'scoped memory for tpu_custom_call.1']
  %s0 = inlined_call_operand.vmem [shape: f32[1,30], index: 0, kind: input, shape index: {}]
  %s1 = inlined_call_operand.vmem [shape: f32[32,3], index: 1, kind: input, shape index: {}]
  %s2 = inlined_call_operand.<no memory space> [shape: f32[1,1], index: 2, kind: input, shape index: {}]
  %s3 = inlined_call_operand.hbm [shape: f32[1,30], index: 3, kind: output, shape index: {}]
  %s4 = sld [smem:[#allocation0]]
  $region22: #{tpu_custom_call.1} parent=0
    _
  %s6 = ssub.s32 1, %s4
  %s7 = scalar_select 0, %s6, %s4
  %v8 = vstv %s2
  %9 = vst [vmem:[#allocation2] sm:$0x1] %v8
  $region1: #{tpu_custom_call.1} parent=0
    #allocation3 [shape = 'u8[512]{0}', space=vmem, size = 0x400, scoped, tag = 'output window, operand 0, single buffered']
    #allocation4 [shape = 's32[1]{0}', space=sflag, size = 0x4, scoped, tag = 'scoped memory for tpu_custom_call.1']
    %10 = vsyncpa [#allocation4], 0
    // Predicated region
    $region2: #{tpu_custom_call.1} parent=1 // pred_check
      _
    $region3: #{tpu_custom_call.1} parent=1 // pred_check_branch
      %12 = sbr.rel (0) target = $region5
    $region4: #{tpu_custom_call.1} parent=1 // pred_region
      _
    $region5: #{tpu_custom_call.1} parent=1 // pred_fallthru
      _
    // Predicated region
    $region6: #{tpu_custom_call.1} parent=1 // pred_check
      _
    $region7: #{tpu_custom_call.1} parent=1 // pred_check_branch
      %14 = sbr.rel (0) target = $region9
    $region8: #{tpu_custom_call.1} parent=1 // pred_region
      _
    $region9: #{tpu_custom_call.1} parent=1 // pred_fallthru
      _
    // Predicated region
    $region10: #{tpu_custom_call.1} parent=1 // pred_check
      _
    $region11: #{tpu_custom_call.1} parent=1 // pred_check_branch
      %16 = sbr.rel (0) target = $region13
    $region12: #{tpu_custom_call.1} parent=1 // pred_region
      _
    $region13: #{tpu_custom_call.1} parent=1 // pred_fallthru
      _
    %v17 = vld [vmem:[%s1] sm:$0xff]
    %v18 = vld [vmem:[%s1 + $0x8] sm:$0xff]
    %v19 = vld [vmem:[%s1 + $0x10] sm:$0xff]
    %v20 = vld [vmem:[%s1 + $0x18] sm:$0xff]
    %v21 = vld [vmem:[#allocation2] sm:$0x1]
    %v22 = vld [vmem:[%s0] sm:$0x1]
    %v24 = vlaneseq
    %v25 = vshrl.u32 %v24, 7
    %v26 = vsub.s32 0, %v25
    %v27 = vrot.slane %v22, %v26
    %30 = vset.pattern.permute.xlu0 0
    %31 = vperm.xlu0 %30, %v17
    %v32 = vpop.permute.xlu0 %31
    %35 = vset.pattern.permute.xlu0 0
    %36 = vperm.xlu0 %35, %v18
    %v37 = vpop.permute.xlu0 %36
    %40 = vset.pattern.permute.xlu0 0
    %41 = vperm.xlu0 %40, %v19
    %v42 = vpop.permute.xlu0 %41
    %45 = vset.pattern.permute.xlu0 0
    %46 = vperm.xlu0 %45, %v20
    %v47 = vpop.permute.xlu0 %46
    %v49 = vmul.f32 %v27, %v32
    %v50 = vmul.f32 %v27, %v37
    %v51 = vmul.f32 %v27, %v42
    %v52 = vmul.f32 %v27, %v47
    %53 = vset.pattern.permute.xlu0 1
    %54 = vperm.xlu0 %53, %v17
    %v55 = vpop.permute.xlu0 %54
    %57 = vset.pattern.permute.xlu0 1
    %58 = vperm.xlu0 %57, %v18
    %v59 = vpop.permute.xlu0 %58
    %61 = vset.pattern.permute.xlu0 1
    %62 = vperm.xlu0 %61, %v19
    %v63 = vpop.permute.xlu0 %62
    %65 = vset.pattern.permute.xlu0 1
    %66 = vperm.xlu0 %65, %v20
    %v67 = vpop.permute.xlu0 %66
    %v69 = vadd.f32 %v49, %v55
    %v70 = vadd.f32 %v50, %v59
    %v71 = vadd.f32 %v51, %v63
    %v72 = vadd.f32 %v52, %v67
    %v73 = vmax.f32 %v69, 0.0
    %v74 = vmax.f32 %v70, 0.0
    %v75 = vmax.f32 %v71, 0.0
    %v76 = vmax.f32 %v72, 0.0
    %77 = vset.pattern.permute.xlu0 2
    %78 = vperm.xlu0 %77, %v17
    %v79 = vpop.permute.xlu0 %78
    %81 = vset.pattern.permute.xlu0 2
    %82 = vperm.xlu0 %81, %v18
    %v83 = vpop.permute.xlu0 %82
    %85 = vset.pattern.permute.xlu0 2
    %86 = vperm.xlu0 %85, %v19
    %v87 = vpop.permute.xlu0 %86
    %89 = vset.pattern.permute.xlu0 2
    %90 = vperm.xlu0 %89, %v20
    %v91 = vpop.permute.xlu0 %90
    %v93 = vmul.f32 %v73, %v79
    %v94 = vmul.f32 %v74, %v83
    %v95 = vmul.f32 %v75, %v87
    %v96 = vmul.f32 %v76, %v91
    %v97 = vadd.f32 %v93, %v94
    %v98 = vadd.f32 %v97, %v95
    %v99 = vadd.f32 %v98, %v96
    %v100 = vrot.slane %v99, 4
    %v101 = vadd.f32 %v99, %v100
    %v102 = vrot.slane %v101, 2
    %v103 = vadd.f32 %v101, %v102
    %v104 = vrot.slane %v103, 1
    %v105 = vadd.f32 %v103, %v104
    %107 = vset.pattern.permute.xlu0 0
    %108 = vperm.xlu0 %107, %v21
    %v109 = vpop.permute.xlu0 %108
    %v111 = vlaneseq
    %v112 = vshrl.u32 %v111, 7
    %v113 = vsub.s32 0, %v112
    %v114 = vrot.slane %v109, %v113
    %v115 = vadd.f32 %v105, %v114
    %116 = vst [vmem:[#allocation3] sm:$0x1] %v115
    // Predicated region
    $region14: #{tpu_custom_call.1} parent=1 // pred_check
      _
    $region15: #{tpu_custom_call.1} parent=1 // pred_check_branch
      %118 = sbr.rel (0) target = $region17
    $region16: #{tpu_custom_call.1} parent=1 // pred_region
      %s120 = ssub.s32 16, 16
      %121 = vsyncadd [#allocation4], %s120
      %s123 = sshll.u32 [#allocation3], 4
      %s124 = int_to_ptr.vmem [resolvable:$true] %s123
      %126 = dma.vmem_to_hbm [thread:$0]  %s124, 16, %s3, [#allocation4]
    $region17: #{tpu_custom_call.1} parent=1 // pred_fallthru
      _
    // Predicated region
    $region18: #{tpu_custom_call.1} parent=1 // pred_check
      _
    $region19: #{tpu_custom_call.1} parent=1 // pred_check_branch
      %128 = sbr.rel (0) target = $region21
    $region20: #{tpu_custom_call.1} parent=1 // pred_region
      %129 = dma.done [#allocation4], 16
    $region21: #{tpu_custom_call.1} parent=1 // pred_fallthru
      _
    %130 = vsyncpa [#allocation4], 1

</llo_original>
